<compile_context>
chip_gen: v7x
topology: tpu7x:2x2x1
jax: 0.10.0
libtpu: 0.0.40
codegen_flags: <defaults>
</compile_context>

<pallas_src>
import jax
import jax.numpy as jnp
import numpy as np
from jax.experimental import pallas as pl
from jax.experimental.pallas import tpu as pltpu


# ----------------------------------------------------------------------------- #
# Pallas kernel: one batch image per grid step, all four branches fused.
# ----------------------------------------------------------------------------- #
def _msb_kernel(rhs_ref, pool_ref, wc_ref, wp_ref, bias_ref, out_ref):
    # rhs_ref : (HW, 25*Cin)  bf16   im2col operand for the three conv branches
    # pool_ref: (9, Cin, HW)  bf16   -inf padded shifted slices for the 3x3 pool
    # wc_ref  : (3*Cout, 25*Cin) bf16  fused [1x1 | 3x3 | 5x5] weight bank (BN folded)
    # wp_ref  : (Cout, Cin)   bf16   pooled-branch 1x1 conv weight (BN folded)
    # bias_ref: (4*Cout, 1)   f32    folded BN biases, branch order [1|2|3|4]
    # out_ref : (4*Cout, HW)  f32

    # Branches 1-3: one lane-dense MXU dot, K = 25*Cin, f32 accumulation.
    acc = jnp.einsum("ck,pk->cp", wc_ref[...], rhs_ref[...],
                     preferred_element_type=jnp.float32)          # (3*Cout, HW)

    # Branch 4 pool: 8 lane-dense vmax ops over the 9 pre-shifted taps.
    mp = pool_ref[0]
    for t in range(1, 9):
        mp = jnp.maximum(mp, pool_ref[t])                         # (Cin, HW) bf16

    acc4 = jnp.dot(wp_ref[...], mp,
                   preferred_element_type=jnp.float32)            # (Cout, HW)

    # Epilogue: single concatenated slab, bias + ReLU, one unmasked full store.
    full = jnp.concatenate([acc, acc4], axis=0)                   # (4*Cout, HW)
    out_ref[...] = jnp.maximum(full + bias_ref[...], 0.0).astype(out_ref.dtype)


# ----------------------------------------------------------------------------- #
# Wrapper: NCHW in / NCHW out, BN folding, im2col construction, pallas_call.
# ----------------------------------------------------------------------------- #
def multi_scale_block(x_nchw, params):
    N, Cin, H, W = x_nchw.shape
    Cout = params["w1"].shape[0]
    C3 = 3 * Cout
    HW = H * W
    K = 25 * Cin
    eps = 1e-5

    x = jnp.transpose(x_nchw, (0, 2, 3, 1)).astype(jnp.float32)   # NHWC

    # --- conv im2col operand: zero padding (pad=2 covers 1x1 / 3x3 / 5x5) -------
    xz = jnp.pad(x, ((0, 0), (2, 2), (2, 2), (0, 0)))
    taps = [xz[:, kh:kh + H, kw:kw + W, :] for kh in range(5) for kw in range(5)]
    rhs = jnp.stack(taps, axis=3).reshape(N, HW, K).astype(jnp.bfloat16)

    # --- pool operand: -inf spatial padding, inner 3x3 ring, lane-dense (Cin,HW) -
    xi = jnp.pad(x, ((0, 0), (1, 1), (1, 1), (0, 0)), constant_values=-jnp.inf)
    pool_taps = []
    for dh in range(3):
        for dw in range(3):
            sl = xi[:, dh:dh + H, dw:dw + W, :]                    # (N, H, W, Cin)
            pool_taps.append(jnp.transpose(sl, (0, 3, 1, 2)).reshape(N, Cin, HW))
    pool = jnp.stack(pool_taps, axis=1).astype(jnp.bfloat16)       # (N, 9, Cin, HW)

    # --- fold eval-mode BatchNorm into conv weights / one bias vector -----------
    def fold(conv_b, bn):
        gamma, beta, mean, var = bn
        s = gamma / jnp.sqrt(var + eps)                            # (Cout,)
        b = (conv_b - mean) * s + beta                             # (Cout,)
        return s, b

    s1, b1 = fold(params["b1"], params["bn1"])
    s2, b2 = fold(params["b3"], params["bn2"])
    s3, b3 = fold(params["b5"], params["bn3"])
    s4, b4 = fold(params["bp"], params["bn4"])

    w1s = params["w1"][:, :, 0, 0] * s1[:, None]                                 # (Cout, Cin)
    w3s = jnp.transpose(params["w3"], (2, 3, 0, 1)) * s2[None, None, :, None]    # (3,3,Cout,Cin)
    w5s = jnp.transpose(params["w5"], (2, 3, 0, 1)) * s3[None, None, :, None]    # (5,5,Cout,Cin)
    wps = (params["wp"][:, :, 0, 0] * s4[:, None]).astype(jnp.bfloat16)          # (Cout, Cin)

    # Fused weight bank (channel rows [b1 | b2 | b3]); column order = tap*Cin + c,
    # matching the im2col RHS.
    wtap = jnp.zeros((5, 5, C3, Cin), jnp.float32)
    wtap = wtap.at[:, :, 2 * Cout:, :].set(w5s)
    wtap = wtap.at[1:4, 1:4, Cout:2 * Cout, :].set(w3s)
    wtap = wtap.at[2, 2, :Cout, :].set(w1s)
    wc = jnp.transpose(wtap.reshape(25, C3, Cin), (1, 0, 2)).reshape(C3, K)
    wc = wc.astype(jnp.bfloat16)

    bias = jnp.concatenate([b1, b2, b3, b4]).reshape(4 * Cout, 1).astype(jnp.float32)

    out = pl.pallas_call(
        _msb_kernel,
        out_shape=jax.ShapeDtypeStruct((N, 4 * Cout, HW), jnp.float32),
        grid_spec=pltpu.PrefetchScalarGridSpec(
            num_scalar_prefetch=0,
            grid=(N,),
            in_specs=[
                pl.BlockSpec((None, HW, K), lambda n: (n, 0, 0)),        # im2col rhs
                pl.BlockSpec((None, 9, Cin, HW), lambda n: (n, 0, 0, 0)),  # pool taps
                pl.BlockSpec((C3, K), lambda n: (0, 0)),                 # fused weights
                pl.BlockSpec((Cout, Cin), lambda n: (0, 0)),             # pool weight
                pl.BlockSpec((4 * Cout, 1), lambda n: (0, 0)),           # folded bias
            ],
            out_specs=pl.BlockSpec((None, 4 * Cout, HW), lambda n: (n, 0, 0)),
        ),
        compiler_params=pltpu.CompilerParams(
            dimension_semantics=("parallel",),
            # Whole working set (double-buffered) is < 0.5 MiB; leave headroom only.
            vmem_limit_bytes=4 * 1024 * 1024),
    )(rhs, pool, wc, wps, bias)

    # Kernel already emits NCHW channel order as (N, 4*Cout, H*W) -> reshape only.
    return out.reshape(N, 4 * Cout, H, W)


# ----------------------------------------------------------------------------- #
# Pure-JAX reference (NCHW, mirrors the PyTorch module in eval mode).
# ----------------------------------------------------------------------------- #
def reference_forward(x, params):
    eps = 1e-5

    def conv(x, w, b, pad):
        y = jax.lax.conv_general_dilated(
            x, w, (1, 1), [(pad, pad), (pad, pad)],
            dimension_numbers=("NCHW", "OIHW", "NCHW"),
            precision=jax.lax.Precision.HIGHEST)
        return y + b[None, :, None, None]

    def bn(x, stats):
        gamma, beta, mean, var = stats
        inv = gamma / jnp.sqrt(var + eps)
        return (x - mean[None, :, None, None]) * inv[None, :, None, None] \
            + beta[None, :, None, None]

    br1 = jax.nn.relu(bn(conv(x, params["w1"], params["b1"], 0), params["bn1"]))
    br2 = jax.nn.relu(bn(conv(x, params["w3"], params["b3"], 1), params["bn2"]))
    br3 = jax.nn.relu(bn(conv(x, params["w5"], params["b5"], 2), params["bn3"]))
    mp = jax.lax.reduce_window(
        x, -jnp.inf, jax.lax.max,
        window_dimensions=(1, 1, 3, 3), window_strides=(1, 1, 1, 1),
        padding=((0, 0), (0, 0), (1, 1), (1, 1)))
    br4 = jax.nn.relu(bn(conv(mp, params["wp"], params["bp"], 0), params["bn4"]))
    return jnp.concatenate([br1, br2, br3, br4], axis=1)


# ----------------------------------------------------------------------------- #
if __name__ == "__main__":
    N, Cin, H, W = 2, 4, 16, 16
    Cout = 8

    key = jax.random.PRNGKey(0)
    ks = jax.random.split(key, 20)

    def bn_stats(k):
        k1, k2, k3, k4 = jax.random.split(k, 4)
        gamma = 1.0 + 0.1 * jax.random.normal(k1, (Cout,), jnp.float32)
        beta = 0.1 * jax.random.normal(k2, (Cout,), jnp.float32)
        mean = 0.1 * jax.random.normal(k3, (Cout,), jnp.float32)
        var = jnp.abs(jax.random.normal(k4, (Cout,), jnp.float32)) + 0.5
        return (gamma, beta, mean, var)

    params = {
        "w1": 0.1 * jax.random.normal(ks[0], (Cout, Cin, 1, 1), jnp.float32),
        "b1": 0.1 * jax.random.normal(ks[1], (Cout,), jnp.float32),
        "w3": 0.1 * jax.random.normal(ks[2], (Cout, Cin, 3, 3), jnp.float32),
        "b3": 0.1 * jax.random.normal(ks[3], (Cout,), jnp.float32),
        "w5": 0.1 * jax.random.normal(ks[4], (Cout, Cin, 5, 5), jnp.float32),
        "b5": 0.1 * jax.random.normal(ks[5], (Cout,), jnp.float32),
        "wp": 0.1 * jax.random.normal(ks[6], (Cout, Cin, 1, 1), jnp.float32),
        "bp": 0.1 * jax.random.normal(ks[7], (Cout,), jnp.float32),
        "bn1": bn_stats(ks[8]),
        "bn2": bn_stats(ks[9]),
        "bn3": bn_stats(ks[10]),
        "bn4": bn_stats(ks[11]),
    }

    x = jax.random.normal(ks[12], (N, Cin, H, W), jnp.float32)

    fwd = jax.jit(multi_scale_block)
    out = jax.block_until_ready(fwd(x, params))
    assert out.shape == (N, 4 * Cout, H, W), out.shape

    ref = jax.block_until_ready(reference_forward(x, params))
    # bf16 MXU operands with f32 accumulation -> slightly looser atol than pure f32.
    np.testing.assert_allclose(np.asarray(out), np.asarray(ref),
                               rtol=2e-2, atol=3e-2)

    print("KERNEL_OK")
</pallas_src>

<mosaic_0001>
module attributes {stable_mosaic.version = 11 : i64} {
  func.func @_msb_kernel(%arg0: i32, %arg1: memref<1x256x100xbf16, #tpu.memory_space<vmem>>, %arg2: memref<1x9x4x256xbf16, #tpu.memory_space<vmem>>, %arg3: memref<24x100xbf16, #tpu.memory_space<vmem>>, %arg4: memref<8x4xbf16, #tpu.memory_space<vmem>>, %arg5: memref<32x1xf32, #tpu.memory_space<vmem>>, %arg6: memref<1x32x256xf32, #tpu.memory_space<vmem>>) attributes {dimension_semantics = [#tpu.dimension_semantics<parallel>], iteration_bounds = array<i64: 2>, scalar_prefetch = 0 : i64, scratch_operands = 0 : i64, tpu.core_type = #tpu.core_type<tc>, window_params = [{transform_indices = @transform_0, window_bounds = array<i64: 1, 256, 100>}, {transform_indices = @transform_1, window_bounds = array<i64: 1, 9, 4, 256>}, {pipeline_mode = #tpu.pipeline_mode<synchronous>, transform_indices = @transform_2, window_bounds = array<i64: 24, 100>}, {pipeline_mode = #tpu.pipeline_mode<synchronous>, transform_indices = @transform_3, window_bounds = array<i64: 8, 4>}, {pipeline_mode = #tpu.pipeline_mode<synchronous>, transform_indices = @transform_4, window_bounds = array<i64: 32, 1>}, {transform_indices = @transform_5, window_bounds = array<i64: 1, 32, 256>}]} {
    %c0 = arith.constant 0 : index
    %c0_0 = arith.constant 0 : index
    %0 = vector.load %arg3[%c0, %c0_0] : memref<24x100xbf16, #tpu.memory_space<vmem>>, vector<24x100xbf16>
    %c0_1 = arith.constant 0 : index
    %c0_2 = arith.constant 0 : index
    %c0_3 = arith.constant 0 : index
    %1 = vector.load %arg1[%c0_1, %c0_2, %c0_3] : memref<1x256x100xbf16, #tpu.memory_space<vmem>>, vector<1x256x100xbf16>
    %2 = vector.shape_cast %1 : vector<1x256x100xbf16> to vector<256x100xbf16>
    "tpu.trace_start"() <{level = 10 : i32, message = "ck,pk->cp"}> : () -> ()
    %cst = arith.constant dense<0.000000e+00> : vector<24x256xf32>
    %3 = tpu.matmul %0, %2, %cst {dimension_numbers = #tpu.dot_dimension_numbers<[1], [1], [0], [0], [0, 0, 1, 0], [], []>} : vector<24x100xbf16>, vector<256x100xbf16>, vector<24x256xf32> -> vector<24x256xf32>
    "tpu.trace_stop"() : () -> ()
    %c0_4 = arith.constant 0 : index
    %c0_5 = arith.constant 0 : index
    %c0_6 = arith.constant 0 : index
    %c0_7 = arith.constant 0 : index
    %4 = vector.load %arg2[%c0_4, %c0_5, %c0_6, %c0_7] : memref<1x9x4x256xbf16, #tpu.memory_space<vmem>>, vector<1x1x4x256xbf16>
    %5 = vector.shape_cast %4 : vector<1x1x4x256xbf16> to vector<4x256xbf16>
    %c0_8 = arith.constant 0 : index
    %c1 = arith.constant 1 : index
    %c0_9 = arith.constant 0 : index
    %c0_10 = arith.constant 0 : index
    %6 = vector.load %arg2[%c0_8, %c1, %c0_9, %c0_10] : memref<1x9x4x256xbf16, #tpu.memory_space<vmem>>, vector<1x1x4x256xbf16>
    %7 = vector.shape_cast %6 : vector<1x1x4x256xbf16> to vector<4x256xbf16>
    %8 = arith.maximumf %5, %7 : vector<4x256xbf16>
    %c0_11 = arith.constant 0 : index
    %c2 = arith.constant 2 : index
    %c0_12 = arith.constant 0 : index
    %c0_13 = arith.constant 0 : index
    %9 = vector.load %arg2[%c0_11, %c2, %c0_12, %c0_13] : memref<1x9x4x256xbf16, #tpu.memory_space<vmem>>, vector<1x1x4x256xbf16>
    %10 = vector.shape_cast %9 : vector<1x1x4x256xbf16> to vector<4x256xbf16>
    %11 = arith.maximumf %8, %10 : vector<4x256xbf16>
    %c0_14 = arith.constant 0 : index
    %c3 = arith.constant 3 : index
    %c0_15 = arith.constant 0 : index
    %c0_16 = arith.constant 0 : index
    %12 = vector.load %arg2[%c0_14, %c3, %c0_15, %c0_16] : memref<1x9x4x256xbf16, #tpu.memory_space<vmem>>, vector<1x1x4x256xbf16>
    %13 = vector.shape_cast %12 : vector<1x1x4x256xbf16> to vector<4x256xbf16>
    %14 = arith.maximumf %11, %13 : vector<4x256xbf16>
    %c0_17 = arith.constant 0 : index
    %c4 = arith.constant 4 : index
    %c0_18 = arith.constant 0 : index
    %c0_19 = arith.constant 0 : index
    %15 = vector.load %arg2[%c0_17, %c4, %c0_18, %c0_19] : memref<1x9x4x256xbf16, #tpu.memory_space<vmem>>, vector<1x1x4x256xbf16>
    %16 = vector.shape_cast %15 : vector<1x1x4x256xbf16> to vector<4x256xbf16>
    %17 = arith.maximumf %14, %16 : vector<4x256xbf16>
    %c0_20 = arith.constant 0 : index
    %c5 = arith.constant 5 : index
    %c0_21 = arith.constant 0 : index
    %c0_22 = arith.constant 0 : index
    %18 = vector.load %arg2[%c0_20, %c5, %c0_21, %c0_22] : memref<1x9x4x256xbf16, #tpu.memory_space<vmem>>, vector<1x1x4x256xbf16>
    %19 = vector.shape_cast %18 : vector<1x1x4x256xbf16> to vector<4x256xbf16>
    %20 = arith.maximumf %17, %19 : vector<4x256xbf16>
    %c0_23 = arith.constant 0 : index
    %c6 = arith.constant 6 : index
    %c0_24 = arith.constant 0 : index
    %c0_25 = arith.constant 0 : index
    %21 = vector.load %arg2[%c0_23, %c6, %c0_24, %c0_25] : memref<1x9x4x256xbf16, #tpu.memory_space<vmem>>, vector<1x1x4x256xbf16>
    %22 = vector.shape_cast %21 : vector<1x1x4x256xbf16> to vector<4x256xbf16>
    %23 = arith.maximumf %20, %22 : vector<4x256xbf16>
    %c0_26 = arith.constant 0 : index
    %c7 = arith.constant 7 : index
    %c0_27 = arith.constant 0 : index
    %c0_28 = arith.constant 0 : index
    %24 = vector.load %arg2[%c0_26, %c7, %c0_27, %c0_28] : memref<1x9x4x256xbf16, #tpu.memory_space<vmem>>, vector<1x1x4x256xbf16>
    %25 = vector.shape_cast %24 : vector<1x1x4x256xbf16> to vector<4x256xbf16>
    %26 = arith.maximumf %23, %25 : vector<4x256xbf16>
    %c0_29 = arith.constant 0 : index
    %c8 = arith.constant 8 : index
    %c0_30 = arith.constant 0 : index
    %c0_31 = arith.constant 0 : index
    %27 = vector.load %arg2[%c0_29, %c8, %c0_30, %c0_31] : memref<1x9x4x256xbf16, #tpu.memory_space<vmem>>, vector<1x1x4x256xbf16>
    %28 = vector.shape_cast %27 : vector<1x1x4x256xbf16> to vector<4x256xbf16>
    %29 = arith.maximumf %26, %28 : vector<4x256xbf16>
    %c0_32 = arith.constant 0 : index
    %c0_33 = arith.constant 0 : index
    %30 = vector.load %arg4[%c0_32, %c0_33] : memref<8x4xbf16, #tpu.memory_space<vmem>>, vector<8x4xbf16>
    %cst_34 = arith.constant dense<0.000000e+00> : vector<8x256xf32>
    %31 = tpu.matmul %30, %29, %cst_34 {dimension_numbers = #tpu.dot_dimension_numbers<[1], [0], [0], [1], [0, 0, 1, 1], [], []>} : vector<8x4xbf16>, vector<4x256xbf16>, vector<8x256xf32> -> vector<8x256xf32>
    %32 = tpu.concatenate %3, %31 in 0 : vector<24x256xf32>, vector<8x256xf32> -> vector<32x256xf32>
    %c0_35 = arith.constant 0 : index
    %c0_36 = arith.constant 0 : index
    %33 = vector.load %arg5[%c0_35, %c0_36] : memref<32x1xf32, #tpu.memory_space<vmem>>, vector<32x1xf32>
    %34 = vector.broadcast %33 : vector<32x1xf32> to vector<32x256xf32>
    %35 = arith.addf %32, %34 : vector<32x256xf32>
    %cst_37 = arith.constant 0.000000e+00 : f32
    %36 = vector.broadcast %cst_37 : f32 to vector<32x256xf32>
    %37 = arith.maximumf %35, %36 : vector<32x256xf32>
    %c0_38 = arith.constant 0 : index
    %c0_39 = arith.constant 0 : index
    %c0_40 = arith.constant 0 : index
    %38 = vector.load %arg6[%c0_38, %c0_39, %c0_40] : memref<1x32x256xf32, #tpu.memory_space<vmem>>, vector<1x32x256xf32>
    %39 = vector.shape_cast %38 : vector<1x32x256xf32> to vector<32x256xf32>
    %40 = vector.shape_cast %37 : vector<32x256xf32> to vector<1x32x256xf32>
    tpu.vector_store %arg6[%c0_38, %c0_39, %c0_40], %40 {strides = array<i32>} : memref<1x32x256xf32, #tpu.memory_space<vmem>>, vector<1x32x256xf32>,
    return
  }
  func.func @transform_0(%arg0: i32) -> (i32, i32, i32) {
    %c0_i32 = arith.constant 0 : i32
    %c0_i32_0 = arith.constant 0 : i32
    %c0_i32_1 = arith.constant 0 : i32
    return %arg0, %c0_i32, %c0_i32_0 : i32, i32, i32
  }
  func.func @transform_1(%arg0: i32) -> (i32, i32, i32, i32) {
    %c0_i32 = arith.constant 0 : i32
    %c0_i32_0 = arith.constant 0 : i32
    %c0_i32_1 = arith.constant 0 : i32
    %c0_i32_2 = arith.constant 0 : i32
    return %arg0, %c0_i32, %c0_i32_0, %c0_i32_1 : i32, i32, i32, i32
  }
  func.func @transform_2(%arg0: i32) -> (i32, i32) {
    %c0_i32 = arith.constant 0 : i32
    %c0_i32_0 = arith.constant 0 : i32
    %c0_i32_1 = arith.constant 0 : i32
    return %c0_i32, %c0_i32_0 : i32, i32
  }
  func.func @transform_3(%arg0: i32) -> (i32, i32) {
    %c0_i32 = arith.constant 0 : i32
    %c0_i32_0 = arith.constant 0 : i32
    %c0_i32_1 = arith.constant 0 : i32
    return %c0_i32, %c0_i32_0 : i32, i32
  }
  func.func @transform_4(%arg0: i32) -> (i32, i32) {
    %c0_i32 = arith.constant 0 : i32
    %c0_i32_0 = arith.constant 0 : i32
    %c0_i32_1 = arith.constant 0 : i32
    return %c0_i32, %c0_i32_0 : i32, i32
  }
  func.func @transform_5(%arg0: i32) -> (i32, i32, i32) {
    %c0_i32 = arith.constant 0 : i32
    %c0_i32_0 = arith.constant 0 : i32
    %c0_i32_1 = arith.constant 0 : i32
    return %arg0, %c0_i32, %c0_i32_0 : i32, i32, i32
  }
}

</mosaic_0001>

<llo_original>
// kernel: multi_scale_block.1
$region0: #{multi_scale_block.1}
  #allocation0 [shape = 'u32[]', space=smem, size = 0x4, offset = 0x4, fixed_abs, tag = 'smem constant byte address 0x4 - core index']
  #allocation1 [shape = 'u32[144,128]{1,0:T(1,128)}', space=vmem, size = 0x12000, scoped, tag = 'internal scratch']
  %s0 = inlined_call_operand.vmem [shape: bf16[2,256,100], index: 0, kind: input, shape index: {}]
  %s1 = inlined_call_operand.vmem [shape: bf16[2,9,4,256], index: 1, kind: input, shape index: {}]
  %s2 = inlined_call_operand.vmem [shape: bf16[24,100], index: 2, kind: input, shape index: {}]
  %s3 = inlined_call_operand.vmem [shape: bf16[8,4], index: 3, kind: input, shape index: {}]
  %s4 = inlined_call_operand.vmem [shape: f32[32,1], index: 4, kind: input, shape index: {}]
  %s5 = inlined_call_operand.vmem [shape: f32[2,32,256], index: 5, kind: output, shape index: {}]
  %s6 = sld [smem:[#allocation0]]
  $region53: #{multi_scale_block.1} parent=0
    _
  %s8 = ssub.s32 1, %s6
  %s9 = scalar_select 0, %s8, %s6
  loop: start=0, step=1, limit=4
  $region2: #{multi_scale_block.1} parent=0 // loop_pre_header
    _
  $region3: #{multi_scale_block.1} parent=0 // loop_header
    %s11 = sphi 0, %s15
    %p12 = scmp.ge.s32.totalorder %s11, 4
    %s21 = sphi 0, %s23
    %s24 = sphi 0, %s21
    %s25 = sphi 0, %s24
    %s41 = sphi 0, %s25
    %s47 = sphi 0, %s49
    %s50 = sphi 0, %s47
    %s51 = sphi 0, %s50
    %s67 = sphi 0, %s51
    %s71 = sphi 0, %s71
    %s73 = sphi 0, %s71
    %s74 = sphi 0, %s73
    %s88 = sphi 0, %s74
    %s92 = sphi 0, %s92
    %s94 = sphi 0, %s92
    %s95 = sphi 0, %s94
    %s109 = sphi 0, %s95
    %s113 = sphi 0, %s113
    %s115 = sphi 0, %s113
    %s116 = sphi 0, %s115
    %s130 = sphi 0, %s116
    %s136 = sphi 0, %s138
    %s139 = sphi 0, %s136
    %s140 = sphi 0, %s139
    %s156 = sphi 0, %s140
  $region4: #{multi_scale_block.1} parent=0 // loop_header_branch
    %14 = sbr.rel (%p12) target = $region8
  $region5: #{multi_scale_block.1} parent=0 // loop_body
    %s16 = ssub.s32 %s11, 1
    %s17 = ssub.s32 %s11, 2
    %s18 = sadd.s32 %s11, 1
    %s19 = ssub.s32 %s11, %s18
    %p20 = scmp.eq.s32.totalorder %s19, 0
    %s22 = sadd.s32 %s21, 1
    %s23 = scalar_select %p20, %s21, %s22
    %p26 = pneg %p20
    %p27 = scmp.eq.s32.totalorder %s11, 1
    %p28 = por %p26, %p27
    %p29 = scmp.ne.s32.totalorder %s21, %s24
    %p30 = scmp.eq.s32.totalorder %s11, 0
    %p31 = por %p29, %p30
    %p32 = scmp.ne.s32.totalorder %s21, %s24
    %p33 = scmp.eq.s32.totalorder %s16, 1
    %p34 = por %p32, %p33
    %p35 = scmp.ne.s32.totalorder %s24, %s25
    %p36 = scmp.eq.s32.totalorder %s16, 0
    %p37 = por %p35, %p36
    %p38 = scmp.ne.s32.totalorder %s24, %s25
    %p39 = scmp.eq.s32.totalorder %s17, 1
    %p40 = por %p38, %p39
    %p42 = scmp.ne.s32.totalorder %s25, %s41
    %p43 = scmp.eq.s32.totalorder %s17, 0
    %p44 = por %p42, %p43
    %s45 = ssub.s32 %s11, %s18
    %p46 = scmp.eq.s32.totalorder %s45, 0
    %s48 = sadd.s32 %s47, 1
    %s49 = scalar_select %p46, %s47, %s48
    %p52 = pneg %p46
    %p53 = scmp.eq.s32.totalorder %s11, 1
    %p54 = por %p52, %p53
    %p55 = scmp.ne.s32.totalorder %s47, %s50
    %p56 = scmp.eq.s32.totalorder %s11, 0
    %p57 = por %p55, %p56
    %p58 = scmp.ne.s32.totalorder %s47, %s50
    %p59 = scmp.eq.s32.totalorder %s16, 1
    %p60 = por %p58, %p59
    %p61 = scmp.ne.s32.totalorder %s50, %s51
    %p62 = scmp.eq.s32.totalorder %s16, 0
    %p63 = por %p61, %p62
    %p64 = scmp.ne.s32.totalorder %s50, %s51
    %p65 = scmp.eq.s32.totalorder %s17, 1
    %p66 = por %p64, %p65
    %p68 = scmp.ne.s32.totalorder %s51, %s67
    %p69 = scmp.eq.s32.totalorder %s17, 0
    %p70 = por %p68, %p69
    %s72 = sadd.s32 %s71, 1
    %p75 = scmp.eq.s32.totalorder %s11, 1
    %p76 = scmp.ne.s32.totalorder %s71, %s73
    %p77 = scmp.eq.s32.totalorder %s11, 0
    %p78 = por %p76, %p77
    %p79 = scmp.ne.s32.totalorder %s71, %s73
    %p80 = scmp.eq.s32.totalorder %s16, 1
    %p81 = por %p79, %p80
    %p82 = scmp.ne.s32.totalorder %s73, %s74
    %p83 = scmp.eq.s32.totalorder %s16, 0
    %p84 = por %p82, %p83
    %p85 = scmp.ne.s32.totalorder %s73, %s74
    %p86 = scmp.eq.s32.totalorder %s17, 1
    %p87 = por %p85, %p86
    %p89 = scmp.ne.s32.totalorder %s74, %s88
    %p90 = scmp.eq.s32.totalorder %s17, 0
    %p91 = por %p89, %p90
    %s93 = sadd.s32 %s92, 1
    %p96 = scmp.eq.s32.totalorder %s11, 1
    %p97 = scmp.ne.s32.totalorder %s92, %s94
    %p98 = scmp.eq.s32.totalorder %s11, 0
    %p99 = por %p97, %p98
    %p100 = scmp.ne.s32.totalorder %s92, %s94
    %p101 = scmp.eq.s32.totalorder %s16, 1
    %p102 = por %p100, %p101
    %p103 = scmp.ne.s32.totalorder %s94, %s95
    %p104 = scmp.eq.s32.totalorder %s16, 0
    %p105 = por %p103, %p104
    %p106 = scmp.ne.s32.totalorder %s94, %s95
    %p107 = scmp.eq.s32.totalorder %s17, 1
    %p108 = por %p106, %p107
    %p110 = scmp.ne.s32.totalorder %s95, %s109
    %p111 = scmp.eq.s32.totalorder %s17, 0
    %p112 = por %p110, %p111
    %s114 = sadd.s32 %s113, 1
    %p117 = scmp.eq.s32.totalorder %s11, 1
    %p118 = scmp.ne.s32.totalorder %s113, %s115
    %p119 = scmp.eq.s32.totalorder %s11, 0
    %p120 = por %p118, %p119
    %p121 = scmp.ne.s32.totalorder %s113, %s115
    %p122 = scmp.eq.s32.totalorder %s16, 1
    %p123 = por %p121, %p122
    %p124 = scmp.ne.s32.totalorder %s115, %s116
    %p125 = scmp.eq.s32.totalorder %s16, 0
    %p126 = por %p124, %p125
    %p127 = scmp.ne.s32.totalorder %s115, %s116
    %p128 = scmp.eq.s32.totalorder %s17, 1
    %p129 = por %p127, %p128
    %p131 = scmp.ne.s32.totalorder %s116, %s130
    %p132 = scmp.eq.s32.totalorder %s17, 0
    %p133 = por %p131, %p132
    %s134 = ssub.s32 %s11, %s18
    %p135 = scmp.eq.s32.totalorder %s134, 0
    %s137 = sadd.s32 %s136, 1
    %s138 = scalar_select %p135, %s136, %s137
    %p141 = pneg %p135
    %p142 = scmp.eq.s32.totalorder %s11, 1
    %p143 = por %p141, %p142
    %p144 = scmp.ne.s32.totalorder %s136, %s139
    %p145 = scmp.eq.s32.totalorder %s11, 0
    %p146 = por %p144, %p145
    %p147 = scmp.ne.s32.totalorder %s136, %s139
    %p148 = scmp.eq.s32.totalorder %s16, 1
    %p149 = por %p147, %p148
    %p150 = scmp.ne.s32.totalorder %s139, %s140
    %p151 = scmp.eq.s32.totalorder %s16, 0
    %p152 = por %p150, %p151
    %p153 = scmp.ne.s32.totalorder %s139, %s140
    %p154 = scmp.eq.s32.totalorder %s17, 1
    %p155 = por %p153, %p154
    %p157 = scmp.ne.s32.totalorder %s140, %s156
    %p158 = scmp.eq.s32.totalorder %s17, 0
    %p159 = por %p157, %p158
    %p160 = scmp.le.s32.totalorder 1, %s11
    %p161 = scmp.lt.s32.totalorder %s11, 3
    %p162 = pnand %p160, %p161
    %p163 = pneg %p162
    // Predicated region
    $region9: #{multi_scale_block.1} parent=5 // pred_check
      _
    $region10: #{multi_scale_block.1} parent=5 // pred_check_branch
      %165 = sbr.rel (%p162) target = $region12
    $region11: #{multi_scale_block.1} parent=5 // pred_region
      %s166 = ssub.s32 %s11, 1
      // Predicated region
      $region13: #{multi_scale_block.1} parent=11 // pred_check
        %p167 = pneg %p84
      $region14: #{multi_scale_block.1} parent=11 // pred_check_branch
        %169 = sbr.rel (%p167) target = $region16
      $region15: #{multi_scale_block.1} parent=11 // pred_region
        _
      $region16: #{multi_scale_block.1} parent=11 // pred_fallthru
        _
      // Predicated region
      $region17: #{multi_scale_block.1} parent=11 // pred_check
        %p170 = pneg %p105
      $region18: #{multi_scale_block.1} parent=11 // pred_check_branch
        %172 = sbr.rel (%p170) target = $region20
      $region19: #{multi_scale_block.1} parent=11 // pred_region
        _
      $region20: #{multi_scale_block.1} parent=11 // pred_fallthru
        _
      // Predicated region
      $region21: #{multi_scale_block.1} parent=11 // pred_check
        %p173 = pneg %p126
      $region22: #{multi_scale_block.1} parent=11 // pred_check_branch
        %175 = sbr.rel (%p173) target = $region24
      $region23: #{multi_scale_block.1} parent=11 // pred_region
        _
      $region24: #{multi_scale_block.1} parent=11 // pred_fallthru
        _
    $region12: #{multi_scale_block.1} parent=5 // pred_fallthru
      _
    %p176 = scmp.lt.s32.totalorder %s11, 2
    // Predicated region
    $region25: #{multi_scale_block.1} parent=5 // pred_check
      %p177 = pneg %p176
    $region26: #{multi_scale_block.1} parent=5 // pred_check_branch
      %179 = sbr.rel (%p177) target = $region28
    $region27: #{multi_scale_block.1} parent=5 // pred_region
      // Predicated region
      $region29: #{multi_scale_block.1} parent=27 // pred_check
        %p180 = pneg %p31
      $region30: #{multi_scale_block.1} parent=27 // pred_check_branch
        %182 = sbr.rel (%p180) target = $region32
      $region31: #{multi_scale_block.1} parent=27 // pred_region
        %p183 = scmp.lt.s32.totalorder %s11, 1
        %s184 = scalar_select %p183, %s11, 1
        %s185 = smul.addr %s184, 32
        %s186 = smul.addr %s185, 4
        %s187 = scalar_lea.vmem %s0, %s186
      $region32: #{multi_scale_block.1} parent=27 // pred_fallthru
        _
      // Predicated region
      $region33: #{multi_scale_block.1} parent=27 // pred_check
        %p188 = pneg %p57
      $region34: #{multi_scale_block.1} parent=27 // pred_check_branch
        %190 = sbr.rel (%p188) target = $region36
      $region35: #{multi_scale_block.1} parent=27 // pred_region
        %p191 = scmp.lt.s32.totalorder %s11, 1
        %s192 = scalar_select %p191, %s11, 1
        %s193 = smul.addr %s192, 18
        %s194 = smul.addr %s193, 2
        %s195 = scalar_lea.vmem %s1, %s194
      $region36: #{multi_scale_block.1} parent=27 // pred_fallthru
        _
    $region28: #{multi_scale_block.1} parent=5 // pred_fallthru
      _
    %p196 = scmp.le.s32.totalorder 1, %s11
    %p197 = scmp.lt.s32.totalorder %s11, 3
    %p198 = pnand %p196, %p197
    %p199 = pneg %p198
    // Predicated region
    $region37: #{multi_scale_block.1} parent=5 // pred_check
      _
    $region38: #{multi_scale_block.1} parent=5 // pred_check_branch
      %201 = sbr.rel (%p198) target = $region40
    $region39: #{multi_scale_block.1} parent=5 // pred_region
      %s202 = ssub.s32 %s11, 1
      %p203 = scmp.lt.s32.totalorder %s16, 1
      %s204 = scalar_select %p203, %s16, 1
      %s205 = smul.addr %s204, 32
      %s206 = smul.addr %s205, 4
      %s207 = scalar_lea.vmem %s0, %s206
      %p208 = pneg %p37
      %p209 = pneg %p34
      %p210 = scmp.lt.s32.totalorder %s16, 1
      %s211 = scalar_select %p210, %s16, 1
      %s212 = smul.addr %s211, 18
      %s213 = smul.addr %s212, 2
      %s214 = scalar_lea.vmem %s1, %s213
      %p215 = pneg %p63
      %p216 = pneg %p60
      %p217 = pneg %p84
      %p218 = pneg %p81
      %p219 = pneg %p105
      %p220 = pneg %p102
      %p221 = pneg %p126
      %p222 = pneg %p123
      %p223 = pneg %p152
      %p224 = pneg %p149
      %p225 = scmp.lt.s32.totalorder %s16, 1
      %s226 = scalar_select %p225, %s16, 1
      %s227 = smul.addr %s226, 8
      %s228 = smul.addr %s227, 8
      %s229 = scalar_lea.vmem %s5, %s228
      %p230 = scmp.lt.s32.totalorder %s16, 1
      %s231 = scalar_select %p230, %s16, 1
      %s232 = smul.addr %s231, 32
      %s233 = smul.addr %s232, 4
      %s234 = scalar_lea.vmem %s0, %s233
      %p235 = scmp.lt.s32.totalorder %s16, 1
      %s236 = scalar_select %p235, %s16, 1
      %s237 = smul.addr %s236, 18
      %s238 = smul.addr %s237, 2
      %s239 = scalar_lea.vmem %s1, %s238
      %p240 = scmp.lt.s32.totalorder %s16, 1
      %s241 = scalar_select %p240, %s16, 1
      %s242 = smul.addr %s241, 8
      %s243 = smul.addr %s242, 8
      %s244 = scalar_lea.vmem %s5, %s243
      %v246 = vld [vmem:[%s2] sm:$0xf]
      %v247 = vld [vmem:[%s2 + $0x4] sm:$0xf]
      %v248 = vld [vmem:[%s2 + $0x8] sm:$0xf]
      %v249 = vld [vmem:[%s234] sm:$0xf]
      %v250 = vld [vmem:[%s234 + $0x4] sm:$0xf]
      %v251 = vld [vmem:[%s234 + $0x8] sm:$0xf]
      %v252 = vld [vmem:[%s234 + $0xc] sm:$0xf]
      %v253 = vld [vmem:[%s234 + $0x10] sm:$0xf]
      %v254 = vld [vmem:[%s234 + $0x14] sm:$0xf]
      %v255 = vld [vmem:[%s234 + $0x18] sm:$0xf]
      %v256 = vld [vmem:[%s234 + $0x1c] sm:$0xf]
      %v257 = vld [vmem:[%s234 + $0x20] sm:$0xf]
      %v258 = vld [vmem:[%s234 + $0x24] sm:$0xf]
      %v259 = vld [vmem:[%s234 + $0x28] sm:$0xf]
      %v260 = vld [vmem:[%s234 + $0x2c] sm:$0xf]
      %v261 = vld [vmem:[%s234 + $0x30] sm:$0xf]
      %v262 = vld [vmem:[%s234 + $0x34] sm:$0xf]
      %v263 = vld [vmem:[%s234 + $0x38] sm:$0xf]
      %v264 = vld [vmem:[%s234 + $0x3c] sm:$0xf]
      %v265 = vld [vmem:[%s234 + $0x40] sm:$0xf]
      %v266 = vld [vmem:[%s234 + $0x44] sm:$0xf]
      %v267 = vld [vmem:[%s234 + $0x48] sm:$0xf]
      %v268 = vld [vmem:[%s234 + $0x4c] sm:$0xf]
      %v269 = vld [vmem:[%s234 + $0x50] sm:$0xf]
      %v270 = vld [vmem:[%s234 + $0x54] sm:$0xf]
      %v271 = vld [vmem:[%s234 + $0x58] sm:$0xf]
      %v272 = vld [vmem:[%s234 + $0x5c] sm:$0xf]
      %v273 = vld [vmem:[%s234 + $0x60] sm:$0xf]
      %v274 = vld [vmem:[%s234 + $0x64] sm:$0xf]
      %v275 = vld [vmem:[%s234 + $0x68] sm:$0xf]
      %v276 = vld [vmem:[%s234 + $0x6c] sm:$0xf]
      %v277 = vld [vmem:[%s234 + $0x70] sm:$0xf]
      %v278 = vld [vmem:[%s234 + $0x74] sm:$0xf]
      %v279 = vld [vmem:[%s234 + $0x78] sm:$0xf]
      %v280 = vld [vmem:[%s234 + $0x7c] sm:$0xf]
      %v284 = vunpack.c.l.b16 %v246
      %v285 = vunpack.c.l.b16 %v247
      %v286 = vunpack.c.l.b16 %v248
      %v287 = vpack.c.b16 %v285, %v284
      %v288 = vpack.c.b16 %v286, %v286
      %v321 = vunpack.c.l.b16 %v249
      %v322 = vunpack.c.l.b16 %v250
      %v323 = vunpack.c.l.b16 %v251
      %v324 = vunpack.c.l.b16 %v252
      %v325 = vunpack.c.l.b16 %v253
      %v326 = vunpack.c.l.b16 %v254
      %v327 = vunpack.c.l.b16 %v255
      %v328 = vunpack.c.l.b16 %v256
      %v329 = vunpack.c.l.b16 %v257
      %v330 = vunpack.c.l.b16 %v258
      %v331 = vunpack.c.l.b16 %v259
      %v332 = vunpack.c.l.b16 %v260
      %v333 = vunpack.c.l.b16 %v261
      %v334 = vunpack.c.l.b16 %v262
      %v335 = vunpack.c.l.b16 %v263
      %v336 = vunpack.c.l.b16 %v264
      %v337 = vunpack.c.l.b16 %v265
      %v338 = vunpack.c.l.b16 %v266
      %v339 = vunpack.c.l.b16 %v267
      %v340 = vunpack.c.l.b16 %v268
      %v341 = vunpack.c.l.b16 %v269
      %v342 = vunpack.c.l.b16 %v270
      %v343 = vunpack.c.l.b16 %v271
      %v344 = vunpack.c.l.b16 %v272
      %v345 = vunpack.c.l.b16 %v273
      %v346 = vunpack.c.l.b16 %v274
      %v347 = vunpack.c.l.b16 %v275
      %v348 = vunpack.c.l.b16 %v276
      %v349 = vunpack.c.l.b16 %v277
      %v350 = vunpack.c.l.b16 %v278
      %v351 = vunpack.c.l.b16 %v279
      %v352 = vunpack.c.l.b16 %v280
      %v353 = vpack.c.b16 %v322, %v321
      %v354 = vpack.c.b16 %v324, %v323
      %v355 = vpack.c.b16 %v326, %v325
      %v356 = vpack.c.b16 %v328, %v327
      %v357 = vpack.c.b16 %v330, %v329
      %v358 = vpack.c.b16 %v332, %v331
      %v359 = vpack.c.b16 %v334, %v333
      %v360 = vpack.c.b16 %v336, %v335
      %v361 = vpack.c.b16 %v338, %v337
      %v362 = vpack.c.b16 %v340, %v339
      %v363 = vpack.c.b16 %v342, %v341
      %v364 = vpack.c.b16 %v344, %v343
      %v365 = vpack.c.b16 %v346, %v345
      %v366 = vpack.c.b16 %v348, %v347
      %v367 = vpack.c.b16 %v350, %v349
      %v368 = vpack.c.b16 %v352, %v351
      %vm369 = vcmask 818176
      %v371 = vsel %vm369, %v287, 0
      %v374 = vsel %vm369, %v288, 0
      %v377 = vsel %vm369, %v353, 0
      %v380 = vsel %vm369, %v354, 0
      %v383 = vsel %vm369, %v355, 0
      %v386 = vsel %vm369, %v356, 0
      %v389 = vsel %vm369, %v357, 0
      %v392 = vsel %vm369, %v358, 0
      %v395 = vsel %vm369, %v359, 0
      %v398 = vsel %vm369, %v360, 0
      %v401 = vsel %vm369, %v361, 0
      %v404 = vsel %vm369, %v362, 0
      %v407 = vsel %vm369, %v363, 0
      %v410 = vsel %vm369, %v364, 0
      %v413 = vsel %vm369, %v365, 0
      %v416 = vsel %vm369, %v366, 0
      %v419 = vsel %vm369, %v367, 0
      %v422 = vsel %vm369, %v368, 0
      %424 = vmatprep.subr.bf16.mxu0 0
      %425 = vmatpush1.bf16.xpose.msra.mxu0 %v377
      %426 = vmatprep.subr.bf16.mxu0 0
      %427 = vmatpush1.bf16.xpose.msra.mxu0 %v380
      %428 = vmatprep.subr.bf16.mxu0 0
      %429 = vmatpush1.bf16.xpose.msra.mxu0 %v383
      %430 = vmatprep.subr.bf16.mxu0 0
      %431 = vmatpush1.bf16.xpose.msra.mxu0 %v386
      %432 = vmatprep.subr.bf16.mxu0 0
      %433 = vmatpush1.bf16.xpose.msra.mxu0 %v389
      %434 = vmatprep.subr.bf16.mxu0 0
      %435 = vmatpush1.bf16.xpose.msra.mxu0 %v392
      %436 = vmatprep.subr.bf16.mxu0 0
      %437 = vmatpush1.bf16.xpose.msra.mxu0 %v395
      %438 = vmatprep.subr.bf16.mxu0 0
      %439 = vmatpush1.bf16.xpose.msra.mxu0 %v398
      %440 = vmatprep.subr.bf16.mxu0 0
      %441 = vmatpush1.bf16.xpose.msra.mxu0 %v401
      %442 = vmatprep.subr.bf16.mxu0 0
      %443 = vmatpush1.bf16.xpose.msra.mxu0 %v404
      %444 = vmatprep.subr.bf16.mxu0 0
      %445 = vmatpush1.bf16.xpose.msra.mxu0 %v407
      %446 = vmatprep.subr.bf16.mxu0 0
      %447 = vmatpush1.bf16.xpose.msra.mxu0 %v410
      %448 = vmatprep.subr.bf16.mxu0 0
      %449 = vmatpush1.bf16.xpose.msra.mxu0 %v413
      %450 = vmatprep.subr.bf16.mxu0 0
      %451 = vmatpush1.bf16.xpose.msra.mxu0 %v416
      %452 = vmatprep.subr.bf16.mxu0 0
      %453 = vmatpush1.bf16.xpose.msra.mxu0 %v419
      %454 = vmatprep.subr.bf16.mxu0 0
      %455 = vmatpush1.bf16.xpose.msra.mxu0 %v422
      %456 = vmatprep.mubr.bf16.mxu0 0
      %457 = vmatmul.mubr.bf16.gmra.mrb[0].mxu0 %v371
      %v458 = vpop.f32.mrb[0].mxu0
      %v459 = vadd.f32 0.0, %v458
      %v460 = vpop.f32.mrb[0].mxu0
      %v461 = vadd.f32 0.0, %v460
      %v462 = vpop.f32.mrb[0].mxu0
      %v463 = vadd.f32 0.0, %v462
      %v464 = vpop.f32.mrb[0].mxu0
      %v465 = vadd.f32 0.0, %v464
      %466 = vmatprep.mubr.bf16.mxu0 0
      %467 = vmatmul.mubr.bf16.gmra.mrb[0].mxu0 %v374
      %v468 = vpop.f32.mrb[0].mxu0
      %v469 = vadd.f32 0.0, %v468
      %v470 = vpop.f32.mrb[0].mxu0
      %v471 = vadd.f32 0.0, %v470
      %v472 = vpop.f32.mrb[0].mxu0
      %v473 = vpop.f32.mrb[0].mxu0
      %474 = vdwg.mxu0
      %v475 = vld [vmem:[%s239] sm:$0xf]
      %s476 = scalar_lea.vmem %s239, 4
      %v477 = vld [vmem:[%s476] sm:$0xf]
      %v478 = vmax.bf16 %v475, %v477
      %s479 = scalar_lea.vmem %s239, 8
      %v480 = vld [vmem:[%s479] sm:$0xf]
      %v481 = vmax.bf16 %v478, %v480
      %s482 = scalar_lea.vmem %s239, 12
      %v483 = vld [vmem:[%s482] sm:$0xf]
      %v484 = vmax.bf16 %v481, %v483
      %s485 = scalar_lea.vmem %s239, 16
      %v486 = vld [vmem:[%s485] sm:$0xf]
      %v487 = vmax.bf16 %v484, %v486
      %s488 = scalar_lea.vmem %s239, 20
      %v489 = vld [vmem:[%s488] sm:$0xf]
      %v490 = vmax.bf16 %v487, %v489
      %s491 = scalar_lea.vmem %s239, 24
      %v492 = vld [vmem:[%s491] sm:$0xf]
      %v493 = vmax.bf16 %v490, %v492
      %s494 = scalar_lea.vmem %s239, 28
      %v495 = vld [vmem:[%s494] sm:$0xf]
      %v496 = vmax.bf16 %v493, %v495
      %s497 = scalar_lea.vmem %s239, 32
      %v498 = vld [vmem:[%s497] sm:$0xf]
      %v499 = vmax.bf16 %v496, %v498
      %v500 = vld [vmem:[%s3] sm:$0xf]
      %v503 = vunpack.c.l.s4 1983009808
      %v504 = vunpack.c.0.s8 %v503
      %v505 = vlaneseq
      %v506 = vshrl.u32 %v505, 7
      %v507 = vsub.s32 %v504, %v506
      %v508 = vrot.slane %v499, %v507
      %v509 = vcombine.high %v508, %v508
      %vm510 = vcmask 31744
      %v512 = vsel %vm510, %v500, 0
      %vm514 = vcmask 1041408
      %v516 = vsel %vm514, %v508, 0
      %v519 = vsel %vm514, %v509, 0
      %521 = vmatprep.subr.bf16.mxu0 %v519
      %522 = vmatpush1.bf16.msra.mxu0 %v516
      %523 = vmatprep.subr.bf16.mxu0 0
      %524 = vmatpush1.bf16.msra.mxu0 0
      %525 = vmatprep.subr.bf16.mxu0 0
      %526 = vmatpush1.bf16.msra.mxu0 0
      %527 = vmatprep.subr.bf16.mxu0 0
      %528 = vmatpush1.bf16.msra.mxu0 0
      %529 = vmatprep.subr.bf16.mxu0 0
      %530 = vmatpush1.bf16.msra.mxu0 0
      %531 = vmatprep.subr.bf16.mxu0 0
      %532 = vmatpush1.bf16.msra.mxu0 0
      %533 = vmatprep.subr.bf16.mxu0 0
      %534 = vmatpush1.bf16.msra.mxu0 0
      %535 = vmatprep.subr.bf16.mxu0 0
      %536 = vmatpush1.bf16.msra.mxu0 0
      %537 = vmatprep.subr.bf16.mxu0 0
      %538 = vmatpush1.bf16.msra.mxu0 0
      %539 = vmatprep.subr.bf16.mxu0 0
      %540 = vmatpush1.bf16.msra.mxu0 0
      %541 = vmatprep.subr.bf16.mxu0 0
      %542 = vmatpush1.bf16.msra.mxu0 0
      %543 = vmatprep.subr.bf16.mxu0 0
      %544 = vmatpush1.bf16.msra.mxu0 0
      %545 = vmatprep.subr.bf16.mxu0 0
      %546 = vmatpush1.bf16.msra.mxu0 0
      %547 = vmatprep.subr.bf16.mxu0 0
      %548 = vmatpush1.bf16.msra.mxu0 0
      %549 = vmatprep.subr.bf16.mxu0 0
      %550 = vmatpush1.bf16.msra.mxu0 0
      %551 = vmatprep.subr.bf16.mxu0 0
      %552 = vmatpush1.bf16.msra.mxu0 0
      %553 = vmatprep.mubr.bf16.mxu0 0
      %554 = vmatmul.mubr.bf16.gmra.mrb[0].mxu0 %v512
      %v555 = vpop.f32.mrb[0].mxu0
      %v556 = vadd.f32 0.0, %v555
      %v557 = vpop.f32.mrb[0].mxu0
      %v558 = vadd.f32 0.0, %v557
      %v559 = vpop.f32.mrb[0].mxu0
      %v560 = vpop.f32.mrb[0].mxu0
      %561 = vdwg.mxu0
      %v562 = vld [vmem:[%s4] sm:$0xff]
      %v563 = vld [vmem:[%s4 + $0x8] sm:$0xff]
      %v564 = vld [vmem:[%s4 + $0x10] sm:$0xff]
      %v565 = vld [vmem:[%s4 + $0x18] sm:$0xff]
      %567 = vset.pattern.permute.xlu0 0
      %568 = vperm.xlu0 %567, %v562
      %v569 = vpop.permute.xlu0 %568
      %572 = vset.pattern.permute.xlu0 0
      %573 = vperm.xlu0 %572, %v563
      %v574 = vpop.permute.xlu0 %573
      %577 = vset.pattern.permute.xlu0 0
      %578 = vperm.xlu0 %577, %v564
      %v579 = vpop.permute.xlu0 %578
      %582 = vset.pattern.permute.xlu0 0
      %583 = vperm.xlu0 %582, %v565
      %v584 = vpop.permute.xlu0 %583
      %v586 = vadd.f32 %v459, %v569
      %v587 = vadd.f32 %v461, %v569
      %v588 = vadd.f32 %v463, %v574
      %v589 = vadd.f32 %v465, %v574
      %v590 = vadd.f32 %v469, %v579
      %v591 = vadd.f32 %v471, %v579
      %v592 = vadd.f32 %v556, %v584
      %v593 = vadd.f32 %v558, %v584
      %v594 = vmax.f32 %v586, 0.0
      %v595 = vmax.f32 %v587, 0.0
      %v596 = vmax.f32 %v588, 0.0
      %v597 = vmax.f32 %v589, 0.0
      %v598 = vmax.f32 %v590, 0.0
      %v599 = vmax.f32 %v591, 0.0
      %v600 = vmax.f32 %v592, 0.0
      %v601 = vmax.f32 %v593, 0.0
      %602 = vst [vmem:[%s244] sm:$0xff] %v594
      %603 = vst [vmem:[%s244 + $0x8] sm:$0xff] %v595
      %604 = vst [vmem:[%s244 + $0x10] sm:$0xff] %v596
      %605 = vst [vmem:[%s244 + $0x18] sm:$0xff] %v597
      %606 = vst [vmem:[%s244 + $0x20] sm:$0xff] %v598
      %607 = vst [vmem:[%s244 + $0x28] sm:$0xff] %v599
      %608 = vst [vmem:[%s244 + $0x30] sm:$0xff] %v600
      %609 = vst [vmem:[%s244 + $0x38] sm:$0xff] %v601
      %p610 = scmp.lt.s32.totalorder %s16, 1
      %s611 = scalar_select %p610, %s16, 1
      %s612 = smul.addr %s611, 8
      %s613 = smul.addr %s612, 8
      %s614 = scalar_lea.vmem %s5, %s613
      // Predicated region
      $region41: #{multi_scale_block.1} parent=39 // pred_check
        %p615 = pneg %p149
      $region42: #{multi_scale_block.1} parent=39 // pred_check_branch
        %617 = sbr.rel (%p615) target = $region44
      $region43: #{multi_scale_block.1} parent=39 // pred_region
        _
      $region44: #{multi_scale_block.1} parent=39 // pred_fallthru
        _
    $region40: #{multi_scale_block.1} parent=5 // pred_fallthru
      _
    %p618 = scmp.le.s32.totalorder 2, %s11
    // Predicated region
    $region45: #{multi_scale_block.1} parent=5 // pred_check
      %p619 = pneg %p618
    $region46: #{multi_scale_block.1} parent=5 // pred_check_branch
      %621 = sbr.rel (%p619) target = $region48
    $region47: #{multi_scale_block.1} parent=5 // pred_region
      %s622 = ssub.s32 %s11, 2
      // Predicated region
      $region49: #{multi_scale_block.1} parent=47 // pred_check
        %p623 = pneg %p155
      $region50: #{multi_scale_block.1} parent=47 // pred_check_branch
        %625 = sbr.rel (%p623) target = $region52
      $region51: #{multi_scale_block.1} parent=47 // pred_region
        %p626 = scmp.lt.s32.totalorder %s17, 1
        %s627 = scalar_select %p626, %s17, 1
        %s628 = smul.addr %s627, 8
        %s629 = smul.addr %s628, 8
        %s630 = scalar_lea.vmem %s5, %s629
      $region52: #{multi_scale_block.1} parent=47 // pred_fallthru
        _
    $region48: #{multi_scale_block.1} parent=5 // pred_fallthru
      _
  $region6: #{multi_scale_block.1} parent=0 // loop_footer
    %s15 = sadd.s32 1, %s11
  $region7: #{multi_scale_block.1} parent=0 // loop_footer_branch
    %10 = sbr.rel target = $region3
  $region8: #{multi_scale_block.1} parent=0 // loop_exit
    _

</llo_original>
